<compile_context>
chip_gen: v5e
topology: v5e:2x2
jax: 0.10.0
libtpu: 0.0.40
codegen_flags: <defaults>
</compile_context>

<pallas_src>
import functools
import math

import jax
import jax.numpy as jnp
from jax.experimental import pallas as pl
from jax.experimental.pallas import tpu as pltpu

LANE = 128                     # lane width
SUBLANE = 8                    # f32 sublanes -> one (8,128) vreg tile
TILE_ELEMS = SUBLANE * LANE    # 1024 elements per (8,128) tile

MAX_BLOCK_TILES = 512          # (512,8,128) f32 block = 2 MiB per input
CACHE_MAX_ELEMS = 6 * 1024 * 1024   # e-cache cap: 24 MiB f32 in VMEM
VAR_EPS = 1e-30                # guard for rsqrt of a cancellation-negative var


def _num_partials():
    """2 partials (one per TensorCore) on v7x, 1 elsewhere."""
    try:
        kind = jax.devices()[0].device_kind.lower()
    except Exception:
        return 1
    return 2 if ("v7" in kind or "7x" in kind) else 1


def _tukey_value(abs_e, c):
    # Matches the torch module: inside -> constant c^2/6, outside -> cubic.
    k = c * c / 6.0
    eg = abs_e * (1.0 / c)
    tmp = 1.0 - eg * eg
    return jnp.where(abs_e < c, k, k * (tmp * tmp * tmp))


def _flatten_pad(x, n_pad):
    n = int(math.prod(x.shape))
    flat = jnp.ravel(x)                 # contiguous flatten: no copy
    if n_pad != n:                      # only ragged sizes pay a pad copy
        flat = jnp.pad(flat, (0, n_pad - n))
    return flat


# ---------------------------------------------------------------------------
# Cached single-read kernel (normalized=False, n <= CACHE_MAX_ELEMS):
#   stream y1/y2 once, accumulate sum(e), cache e in VMEM; at the last grid
#   step compute mean, two-pass variance and the Tukey sum from the cache.
# ---------------------------------------------------------------------------
def _cached_kernel(y1_ref, y2_ref, out_ref, cache_ref, acc_s,
                   *, c, n, pad, block_tiles, n_blocks):
    i = pl.program_id(0)

    @pl.when(i == 0)
    def _init():
        acc_s[...] = jnp.zeros_like(acc_s)

    e = y1_ref[...].astype(jnp.float32) - y2_ref[...].astype(jnp.float32)
    acc_s[...] += jnp.sum(e, axis=0, keepdims=True)        # (1,8,128) VPU adds
    off = pl.multiple_of(i * block_tiles, block_tiles)
    cache_ref[pl.ds(off, block_tiles)] = e                  # persist e in VMEM

    @pl.when(i == n_blocks - 1)
    def _finalize():
        mean = jnp.sum(acc_s[...]) / n                      # padded e == 0

        # Pass 2a over the cache: torch-style two-pass (centered) variance.
        acc_s[...] = jnp.zeros_like(acc_s)

        def ssq_body(j, carry):
            o = pl.multiple_of(j * block_tiles, block_tiles)
            d = cache_ref[pl.ds(o, block_tiles)] - mean
            acc_s[...] += jnp.sum(d * d, axis=0, keepdims=True)
            return carry

        jax.lax.fori_loop(0, n_blocks, ssq_body, 0)
        ssq = jnp.sum(acc_s[...])
        if pad:
            # padded cached e == 0 -> each contributed (0 - mean)^2
            ssq = ssq - pad * (mean * mean)
        var = ssq / (n - 1)                                 # unbiased (N-1)
        inv_std = jax.lax.rsqrt(jnp.maximum(var, VAR_EPS))

        # Pass 2b over the cache: Tukey sum.
        acc_s[...] = jnp.zeros_like(acc_s)

        def tuk_body(j, carry):
            o = pl.multiple_of(j * block_tiles, block_tiles)
            en = (cache_ref[pl.ds(o, block_tiles)] - mean) * inv_std
            acc_s[...] += jnp.sum(_tukey_value(jnp.abs(en), c),
                                  axis=0, keepdims=True)
            return carry

        jax.lax.fori_loop(0, n_blocks, tuk_body, 0)
        total = jnp.sum(acc_s[...])
        if pad:
            # every padded element has the same (analytic) Tukey value
            total = total - pad * _tukey_value(jnp.abs((0.0 - mean) * inv_std), c)
        out_ref[...] = jnp.reshape(total / n, (1, 1))


def _tukey_loss_cached(y1, y2, c, n):
    tiles_needed = pl.cdiv(n, TILE_ELEMS)
    n_blocks = int(pl.cdiv(tiles_needed, MAX_BLOCK_TILES))
    block_tiles = int(pl.cdiv(tiles_needed, n_blocks))
    total_tiles = n_blocks * block_tiles                    # overshoot < n_blocks tiles
    n_pad = total_tiles * TILE_ELEMS
    pad = n_pad - n

    y1f = _flatten_pad(y1, n_pad).reshape(total_tiles, SUBLANE, LANE)
    y2f = _flatten_pad(y2, n_pad).reshape(total_tiles, SUBLANE, LANE)

    block_bytes = block_tiles * TILE_ELEMS * 4
    cache_bytes = total_tiles * TILE_ELEMS * 4
    # cache + 2 inputs x 2 pipeline buffers + margin; <= ~36 MiB at the cap,
    # well under v7x's 64 MiB physical VMEM and v5e/v6e's 128 MiB.
    vmem_limit = int(max(cache_bytes + 4 * block_bytes + (4 << 20), 32 << 20))

    in_spec = pl.BlockSpec((block_tiles, SUBLANE, LANE), lambda i: (i, 0, 0))
    out = pl.pallas_call(
        functools.partial(_cached_kernel, c=float(c), n=n, pad=pad,
                          block_tiles=block_tiles, n_blocks=n_blocks),
        out_shape=jax.ShapeDtypeStruct((1, 1), jnp.float32),
        grid=(n_blocks,),
        in_specs=[in_spec, in_spec],
        out_specs=pl.BlockSpec((1, 1), lambda i: (0, 0)),
        scratch_shapes=[pltpu.VMEM((total_tiles, SUBLANE, LANE), jnp.float32),
                        pltpu.VMEM((1, SUBLANE, LANE), jnp.float32)],
        compiler_params=pltpu.CompilerParams(
            dimension_semantics=("arbitrary",),
            vmem_limit_bytes=vmem_limit),
    )(y1f, y2f)
    return out[0, 0]


# ---------------------------------------------------------------------------
# Streaming fallback (normalized=True, or n > CACHE_MAX_ELEMS).
# Pass 1: sum(e), sum(e^2) scalar partials.  Pass 2: Tukey scalar partials.
# ---------------------------------------------------------------------------
def _stats_kernel(y1_ref, y2_ref, sum_ref, sumsq_ref, acc_s, acc_q):
    i = pl.program_id(1)

    @pl.when(i == 0)
    def _init():
        acc_s[...] = jnp.zeros_like(acc_s)
        acc_q[...] = jnp.zeros_like(acc_q)

    e = y1_ref[...].astype(jnp.float32) - y2_ref[...].astype(jnp.float32)
    # Zero padding => padded e == 0 contributes nothing; no validity mask.
    acc_s[...] += jnp.sum(e, axis=0, keepdims=True)
    acc_q[...] += jnp.sum(e * e, axis=0, keepdims=True)

    @pl.when(i == pl.num_programs(1) - 1)
    def _fin():
        # In-kernel final cross-lane reduce -> scalar partials (one XLU reduce).
        sum_ref[...] = jnp.reshape(jnp.sum(acc_s[...]), (1, 1, 1))
        sumsq_ref[...] = jnp.reshape(jnp.sum(acc_q[...]), (1, 1, 1))


def _tukey_kernel(scal_ref, y1_ref, y2_ref, out_ref, acc, *, c):
    i = pl.program_id(1)

    @pl.when(i == 0)
    def _init():
        acc[...] = jnp.zeros_like(acc)

    mean = scal_ref[0]
    inv_std = scal_ref[1]
    e = (y1_ref[...].astype(jnp.float32) - y2_ref[...].astype(jnp.float32)
         - mean) * inv_std
    acc[...] += jnp.sum(_tukey_value(jnp.abs(e), c), axis=0, keepdims=True)

    @pl.when(i == pl.num_programs(1) - 1)
    def _fin():
        out_ref[...] = jnp.reshape(jnp.sum(acc[...]), (1, 1, 1))


def _tukey_loss_streaming(y1, y2, c, normalized, n):
    np_ = _num_partials()
    tiles_needed = pl.cdiv(n, TILE_ELEMS)
    n_inner = int(pl.cdiv(tiles_needed, np_ * MAX_BLOCK_TILES))
    block_tiles = int(pl.cdiv(tiles_needed, np_ * n_inner))
    total_tiles = np_ * n_inner * block_tiles               # small overshoot
    n_pad = total_tiles * TILE_ELEMS
    pad = n_pad - n

    y1f = _flatten_pad(y1, n_pad).reshape(total_tiles, SUBLANE, LANE)
    y2f = _flatten_pad(y2, n_pad).reshape(total_tiles, SUBLANE, LANE)

    tile_spec = pl.BlockSpec((block_tiles, SUBLANE, LANE),
                             lambda ci, ii: (ci * n_inner + ii, 0, 0))
    part_spec = pl.BlockSpec((1, 1, 1), lambda ci, ii: (ci, 0, 0))
    part_shape = jax.ShapeDtypeStruct((np_, 1, 1), jnp.float32)
    grid = (np_, n_inner)
    cparams = pltpu.CompilerParams(
        dimension_semantics=("parallel", "arbitrary"))

    if not normalized:
        s_part, q_part = pl.pallas_call(
            _stats_kernel,
            out_shape=(part_shape, part_shape),
            grid=grid,
            in_specs=[tile_spec, tile_spec],
            out_specs=(part_spec, part_spec),
            scratch_shapes=[pltpu.VMEM((1, SUBLANE, LANE), jnp.float32),
                            pltpu.VMEM((1, SUBLANE, LANE), jnp.float32)],
            compiler_params=cparams,
        )(y1f, y2f)
        s = jnp.sum(s_part)
        q = jnp.sum(q_part)
        mean = s / n
        # Single-pass variance (clamped before rsqrt); the cached path uses a
        # true two-pass variance -- this fallback only runs for very large n.
        var = (q - s * s / n) / (n - 1)
        inv_std = jax.lax.rsqrt(jnp.maximum(var, VAR_EPS))
    else:
        mean = jnp.float32(0.0)
        inv_std = jnp.float32(1.0)

    scal = jnp.stack([mean, inv_std]).astype(jnp.float32)   # -> SMEM

    tuk_part = pl.pallas_call(
        functools.partial(_tukey_kernel, c=float(c)),
        out_shape=part_shape,
        grid=grid,
        in_specs=[pl.BlockSpec(memory_space=pltpu.MemorySpace.SMEM),
                  tile_spec, tile_spec],
        out_specs=part_spec,
        scratch_shapes=[pltpu.VMEM((1, SUBLANE, LANE), jnp.float32)],
        compiler_params=cparams,
    )(scal, y1f, y2f)

    total = jnp.sum(tuk_part)
    if pad:
        # Every padded element has raw error 0 -> identical Tukey value;
        # subtract its contribution analytically instead of masking in-kernel.
        pad_val = _tukey_value(jnp.abs((0.0 - mean) * inv_std), float(c))
        total = total - pad * pad_val
    return (total / n).astype(jnp.float32)


def tukey_loss(y1, y2, c=4.685, normalized=False, force_streaming=False):
    assert y1.shape == y2.shape
    n = int(math.prod(y1.shape))
    if (not normalized) and (not force_streaming) and n <= CACHE_MAX_ELEMS:
        return _tukey_loss_cached(y1, y2, c, n)
    return _tukey_loss_streaming(y1, y2, c, normalized, n)


def tukey_loss_ref(y1, y2, c=4.685, normalized=False):
    err = (y1 - y2).astype(jnp.float32)
    if not normalized:
        err = (err - err.mean()) / jnp.sqrt(err.var(ddof=1))
    a = jnp.abs(err)
    k = c * c / 6.0
    eg = a / c
    tmp = 1.0 - eg * eg
    return jnp.where(a < c, k, k * tmp * tmp * tmp).mean()


if __name__ == "__main__":
    key = jax.random.PRNGKey(0)
    k1, k2, k3, k4 = jax.random.split(key, 4)

    # Small NCHW example (batch=2, channels=4, 16x16) -> cached single-read path.
    y1 = jax.random.normal(k1, (2, 4, 16, 16), dtype=jnp.float32) * 3.0
    y2 = jax.random.normal(k2, (2, 4, 16, 16), dtype=jnp.float32)
    out = tukey_loss(y1, y2)
    jax.block_until_ready(out)
    ref = tukey_loss_ref(y1, y2)
    assert jnp.allclose(out, ref, rtol=2e-4, atol=1e-5), (out, ref)

    # normalized=True -> single streaming Tukey pass (stats pass skipped).
    out_n = tukey_loss(y1, y2, normalized=True)
    ref_n = tukey_loss_ref(y1, y2, normalized=True)
    assert jnp.allclose(out_n, ref_n, rtol=2e-4, atol=1e-4), (out_n, ref_n)

    # Ragged size: cached path (zero-pad + analytic pad correction) and the
    # forced two-pass streaming path.
    y1r = jax.random.normal(k3, (3, 5, 17, 13), dtype=jnp.float32) * 2.0
    y2r = jax.random.normal(k4, (3, 5, 17, 13), dtype=jnp.float32)
    ref_r = tukey_loss_ref(y1r, y2r)
    out_rc = tukey_loss(y1r, y2r)
    assert jnp.allclose(out_rc, ref_r, rtol=2e-4, atol=1e-5), (out_rc, ref_r)
    out_rs = tukey_loss(y1r, y2r, force_streaming=True)
    assert jnp.allclose(out_rs, ref_r, rtol=2e-4, atol=1e-5), (out_rs, ref_r)

    # Medium input (640 tiles): cached path with 2 blocks (multi-step grid,
    # fori_loop finalize sweeps), forced streaming path with 2 inner steps,
    # and the normalized single-pass streaming path.
    y1m = jax.random.normal(k1, (2, 5, 128, 512), dtype=jnp.float32) * 1.5
    y2m = jax.random.normal(k2, (2, 5, 128, 512), dtype=jnp.float32)
    ref_m = tukey_loss_ref(y1m, y2m)
    out_m = tukey_loss(y1m, y2m)
    assert jnp.allclose(out_m, ref_m, rtol=5e-4, atol=1e-5), (out_m, ref_m)
    out_ms = tukey_loss(y1m, y2m, force_streaming=True)
    assert jnp.allclose(out_ms, ref_m, rtol=5e-4, atol=1e-5), (out_ms, ref_m)
    out_mn = tukey_loss(y1m, y2m, normalized=True)
    ref_mn = tukey_loss_ref(y1m, y2m, normalized=True)
    assert jnp.allclose(out_mn, ref_mn, rtol=5e-4, atol=1e-3), (out_mn, ref_mn)

    print("KERNEL_OK")
</pallas_src>

<mosaic_0001>
module attributes {stable_mosaic.version = 11 : i64} {
  func.func @_cached_kernel(%arg0: i32, %arg1: memref<2x8x128xf32, #tpu.memory_space<vmem>>, %arg2: memref<2x8x128xf32, #tpu.memory_space<vmem>>, %arg3: memref<1x1xf32, #tpu.memory_space<vmem>>, %arg4: memref<2x8x128xf32, #tpu.memory_space<vmem>>, %arg5: memref<1x8x128xf32, #tpu.memory_space<vmem>>) attributes {dimension_semantics = [#tpu.dimension_semantics<arbitrary>], iteration_bounds = array<i64: 1>, scalar_prefetch = 0 : i64, scratch_operands = 2 : i64, tpu.core_type = #tpu.core_type<tc>, window_params = [{transform_indices = @transform_0, window_bounds = array<i64: 2, 8, 128>}, {transform_indices = @transform_1, window_bounds = array<i64: 2, 8, 128>}, {pipeline_mode = #tpu.pipeline_mode<synchronous>, transform_indices = @transform_2, window_bounds = array<i64: 1, 1>}]} {
    %c0_i32 = arith.constant 0 : i32
    %0 = arith.cmpi eq, %arg0, %c0_i32 : i32
    %1 = arith.extui %0 : i1 to i32
    %c0_i32_0 = arith.constant 0 : i32
    %2 = arith.cmpi ne, %1, %c0_i32_0 : i32
    scf.if %2 {
      %cst_16 = arith.constant 0.000000e+00 : f32
      %18 = vector.broadcast %cst_16 : f32 to vector<1x8x128xf32>
      %c0_17 = arith.constant 0 : index
      %c0_18 = arith.constant 0 : index
      %c0_19 = arith.constant 0 : index
      %19 = vector.load %arg5[%c0_17, %c0_18, %c0_19] : memref<1x8x128xf32, #tpu.memory_space<vmem>>, vector<1x8x128xf32>
      tpu.vector_store %arg5[%c0_17, %c0_18, %c0_19], %18 {strides = array<i32>} : memref<1x8x128xf32, #tpu.memory_space<vmem>>, vector<1x8x128xf32>,
    } else {
    }
    %c0 = arith.constant 0 : index
    %c0_1 = arith.constant 0 : index
    %c0_2 = arith.constant 0 : index
    %3 = vector.load %arg1[%c0, %c0_1, %c0_2] : memref<2x8x128xf32, #tpu.memory_space<vmem>>, vector<2x8x128xf32>
    %c0_3 = arith.constant 0 : index
    %c0_4 = arith.constant 0 : index
    %c0_5 = arith.constant 0 : index
    %4 = vector.load %arg2[%c0_3, %c0_4, %c0_5] : memref<2x8x128xf32, #tpu.memory_space<vmem>>, vector<2x8x128xf32>
    %5 = arith.subf %3, %4 : vector<2x8x128xf32>
    %c0_6 = arith.constant 0 : index
    %c0_7 = arith.constant 0 : index
    %c0_8 = arith.constant 0 : index
    %6 = vector.load %arg5[%c0_6, %c0_7, %c0_8] : memref<1x8x128xf32, #tpu.memory_space<vmem>>, vector<1x8x128xf32>
    %cst = arith.constant dense<0.000000e+00> : vector<8x128xf32>
    %7 = vector.multi_reduction <add>, %5, %cst [0] : vector<2x8x128xf32> to vector<8x128xf32>
    %8 = vector.shape_cast %7 : vector<8x128xf32> to vector<1x8x128xf32>
    %9 = arith.addf %6, %8 : vector<1x8x128xf32>
    %c0_9 = arith.constant 0 : index
    %c0_10 = arith.constant 0 : index
    %c0_11 = arith.constant 0 : index
    %10 = vector.load %arg5[%c0_9, %c0_10, %c0_11] : memref<1x8x128xf32, #tpu.memory_space<vmem>>, vector<1x8x128xf32>
    tpu.vector_store %arg5[%c0_9, %c0_10, %c0_11], %9 {strides = array<i32>} : memref<1x8x128xf32, #tpu.memory_space<vmem>>, vector<1x8x128xf32>,
    %c2_i32 = arith.constant 2 : i32
    %11 = arith.muli %arg0, %c2_i32 : i32
    %12 = tpu.assume_multiple %11, 2 : i32
    %13 = arith.index_cast %12 : i32 to index
    %c0_12 = arith.constant 0 : index
    %c0_13 = arith.constant 0 : index
    %14 = vector.load %arg4[%13, %c0_12, %c0_13] : memref<2x8x128xf32, #tpu.memory_space<vmem>>, vector<2x8x128xf32>
    tpu.vector_store %arg4[%13, %c0_12, %c0_13], %5 {strides = array<i32>} : memref<2x8x128xf32, #tpu.memory_space<vmem>>, vector<2x8x128xf32>,
    %c0_i32_14 = arith.constant 0 : i32
    %15 = arith.cmpi eq, %arg0, %c0_i32_14 : i32
    %16 = arith.extui %15 : i1 to i32
    %c0_i32_15 = arith.constant 0 : i32
    %17 = arith.cmpi ne, %16, %c0_i32_15 : i32
    scf.if %17 {
      %c0_16 = arith.constant 0 : index
      %c0_17 = arith.constant 0 : index
      %c0_18 = arith.constant 0 : index
      %18 = vector.load %arg5[%c0_16, %c0_17, %c0_18] : memref<1x8x128xf32, #tpu.memory_space<vmem>>, vector<1x8x128xf32>
      %19 = vector.shape_cast %18 : vector<1x8x128xf32> to vector<1x1x8x128xf32>
      %cst_19 = arith.constant dense<0.000000e+00> : vector<1xf32>
      %20 = vector.multi_reduction <add>, %19, %cst_19 [1, 2, 3] : vector<1x1x8x128xf32> to vector<1xf32>
      %21 = vector.shape_cast %20 : vector<1xf32> to vector<1x1x1x1xf32>
      %22 = vector.extract %21[0, 0, 0, 0] : f32 from vector<1x1x1x1xf32>
      %cst_20 = arith.constant 2.048000e+03 : f32
      %23 = arith.divf %22, %cst_20 : f32
      %cst_21 = arith.constant 0.000000e+00 : f32
      %24 = vector.broadcast %cst_21 : f32 to vector<1x8x128xf32>
      %c0_22 = arith.constant 0 : index
      %c0_23 = arith.constant 0 : index
      %c0_24 = arith.constant 0 : index
      %25 = vector.load %arg5[%c0_22, %c0_23, %c0_24] : memref<1x8x128xf32, #tpu.memory_space<vmem>>, vector<1x8x128xf32>
      tpu.vector_store %arg5[%c0_22, %c0_23, %c0_24], %24 {strides = array<i32>} : memref<1x8x128xf32, #tpu.memory_space<vmem>>, vector<1x8x128xf32>,
      %c0_i32_25 = arith.constant 0 : i32
      %c2_i32_26 = arith.constant 2 : i32
      %26 = arith.muli %c0_i32_25, %c2_i32_26 : i32
      %27 = tpu.assume_multiple %26, 2 : i32
      %28 = arith.index_cast %27 : i32 to index
      %c0_27 = arith.constant 0 : index
      %c0_28 = arith.constant 0 : index
      %29 = vector.load %arg4[%28, %c0_27, %c0_28] : memref<2x8x128xf32, #tpu.memory_space<vmem>>, vector<2x8x128xf32>
      %30 = vector.broadcast %23 : f32 to vector<2x8x128xf32>
      %31 = arith.subf %29, %30 : vector<2x8x128xf32>
      %c0_29 = arith.constant 0 : index
      %c0_30 = arith.constant 0 : index
      %c0_31 = arith.constant 0 : index
      %32 = vector.load %arg5[%c0_29, %c0_30, %c0_31] : memref<1x8x128xf32, #tpu.memory_space<vmem>>, vector<1x8x128xf32>
      %33 = arith.mulf %31, %31 : vector<2x8x128xf32>
      %cst_32 = arith.constant dense<0.000000e+00> : vector<8x128xf32>
      %34 = vector.multi_reduction <add>, %33, %cst_32 [0] : vector<2x8x128xf32> to vector<8x128xf32>
      %35 = vector.shape_cast %34 : vector<8x128xf32> to vector<1x8x128xf32>
      %36 = arith.addf %32, %35 : vector<1x8x128xf32>
      %c0_33 = arith.constant 0 : index
      %c0_34 = arith.constant 0 : index
      %c0_35 = arith.constant 0 : index
      %37 = vector.load %arg5[%c0_33, %c0_34, %c0_35] : memref<1x8x128xf32, #tpu.memory_space<vmem>>, vector<1x8x128xf32>
      tpu.vector_store %arg5[%c0_33, %c0_34, %c0_35], %36 {strides = array<i32>} : memref<1x8x128xf32, #tpu.memory_space<vmem>>, vector<1x8x128xf32>,
      %c1_i32 = arith.constant 1 : i32
      %c0_36 = arith.constant 0 : index
      %c0_37 = arith.constant 0 : index
      %c0_38 = arith.constant 0 : index
      %38 = vector.load %arg5[%c0_36, %c0_37, %c0_38] : memref<1x8x128xf32, #tpu.memory_space<vmem>>, vector<1x8x128xf32>
      %39 = vector.shape_cast %38 : vector<1x8x128xf32> to vector<1x1x8x128xf32>
      %cst_39 = arith.constant dense<0.000000e+00> : vector<1xf32>
      %40 = vector.multi_reduction <add>, %39, %cst_39 [1, 2, 3] : vector<1x1x8x128xf32> to vector<1xf32>
      %41 = vector.shape_cast %40 : vector<1xf32> to vector<1x1x1x1xf32>
      %42 = vector.extract %41[0, 0, 0, 0] : f32 from vector<1x1x1x1xf32>
      %cst_40 = arith.constant 2.047000e+03 : f32
      %43 = arith.divf %42, %cst_40 : f32
      %cst_41 = arith.constant 1.000000e-30 : f32
      %44 = arith.maximumf %43, %cst_41 : f32
      %45 = math.rsqrt %44 : f32
      %cst_42 = arith.constant 0.000000e+00 : f32
      %46 = vector.broadcast %cst_42 : f32 to vector<1x8x128xf32>
      %c0_43 = arith.constant 0 : index
      %c0_44 = arith.constant 0 : index
      %c0_45 = arith.constant 0 : index
      %47 = vector.load %arg5[%c0_43, %c0_44, %c0_45] : memref<1x8x128xf32, #tpu.memory_space<vmem>>, vector<1x8x128xf32>
      tpu.vector_store %arg5[%c0_43, %c0_44, %c0_45], %46 {strides = array<i32>} : memref<1x8x128xf32, #tpu.memory_space<vmem>>, vector<1x8x128xf32>,
      %c0_i32_46 = arith.constant 0 : i32
      %c2_i32_47 = arith.constant 2 : i32
      %48 = arith.muli %c0_i32_46, %c2_i32_47 : i32
      %49 = tpu.assume_multiple %48, 2 : i32
      %50 = arith.index_cast %49 : i32 to index
      %c0_48 = arith.constant 0 : index
      %c0_49 = arith.constant 0 : index
      %51 = vector.load %arg4[%50, %c0_48, %c0_49] : memref<2x8x128xf32, #tpu.memory_space<vmem>>, vector<2x8x128xf32>
      %52 = vector.broadcast %23 : f32 to vector<2x8x128xf32>
      %53 = arith.subf %51, %52 : vector<2x8x128xf32>
      %54 = vector.broadcast %45 : f32 to vector<2x8x128xf32>
      %55 = arith.mulf %53, %54 : vector<2x8x128xf32>
      %c0_50 = arith.constant 0 : index
      %c0_51 = arith.constant 0 : index
      %c0_52 = arith.constant 0 : index
      %56 = vector.load %arg5[%c0_50, %c0_51, %c0_52] : memref<1x8x128xf32, #tpu.memory_space<vmem>>, vector<1x8x128xf32>
      %57 = math.absf %55 : vector<2x8x128xf32>
      %cst_53 = arith.constant 0.213447168 : f32
      %58 = vector.broadcast %cst_53 : f32 to vector<2x8x128xf32>
      %59 = arith.mulf %57, %58 : vector<2x8x128xf32>
      %60 = arith.mulf %59, %59 : vector<2x8x128xf32>
      %cst_54 = arith.constant 1.000000e+00 : f32
      %61 = vector.broadcast %cst_54 : f32 to vector<2x8x128xf32>
      %62 = arith.subf %61, %60 : vector<2x8x128xf32>
      %cst_55 = arith.constant 4.685000e+00 : f32
      %63 = vector.broadcast %cst_55 : f32 to vector<2x8x128xf32>
      %64 = arith.cmpf olt, %57, %63 : vector<2x8x128xf32>
      %65 = arith.mulf %62, %62 : vector<2x8x128xf32>
      %66 = arith.mulf %65, %62 : vector<2x8x128xf32>
      %cst_56 = arith.constant 3.65820408 : f32
      %67 = vector.broadcast %cst_56 : f32 to vector<2x8x128xf32>
      %68 = arith.mulf %67, %66 : vector<2x8x128xf32>
      %cst_57 = arith.constant 3.65820408 : f32
      %69 = vector.broadcast %cst_57 : f32 to vector<2x8x128xf32>
      %70 = arith.select %64, %69, %68 : vector<2x8x128xi1>, vector<2x8x128xf32>
      %cst_58 = arith.constant dense<0.000000e+00> : vector<8x128xf32>
      %71 = vector.multi_reduction <add>, %70, %cst_58 [0] : vector<2x8x128xf32> to vector<8x128xf32>
      %72 = vector.shape_cast %71 : vector<8x128xf32> to vector<1x8x128xf32>
      %73 = arith.addf %56, %72 : vector<1x8x128xf32>
      %c0_59 = arith.constant 0 : index
      %c0_60 = arith.constant 0 : index
      %c0_61 = arith.constant 0 : index
      %74 = vector.load %arg5[%c0_59, %c0_60, %c0_61] : memref<1x8x128xf32, #tpu.memory_space<vmem>>, vector<1x8x128xf32>
      tpu.vector_store %arg5[%c0_59, %c0_60, %c0_61], %73 {strides = array<i32>} : memref<1x8x128xf32, #tpu.memory_space<vmem>>, vector<1x8x128xf32>,
      %c1_i32_62 = arith.constant 1 : i32
      %c0_63 = arith.constant 0 : index
      %c0_64 = arith.constant 0 : index
      %c0_65 = arith.constant 0 : index
      %75 = vector.load %arg5[%c0_63, %c0_64, %c0_65] : memref<1x8x128xf32, #tpu.memory_space<vmem>>, vector<1x8x128xf32>
      %76 = vector.shape_cast %75 : vector<1x8x128xf32> to vector<1x1x8x128xf32>
      %cst_66 = arith.constant dense<0.000000e+00> : vector<1xf32>
      %77 = vector.multi_reduction <add>, %76, %cst_66 [1, 2, 3] : vector<1x1x8x128xf32> to vector<1xf32>
      %78 = vector.shape_cast %77 : vector<1xf32> to vector<1x1x1x1xf32>
      %79 = vector.extract %78[0, 0, 0, 0] : f32 from vector<1x1x1x1xf32>
      %cst_67 = arith.constant 2.048000e+03 : f32
      %80 = arith.divf %79, %cst_67 : f32
      %81 = vector.broadcast %80 : f32 to vector<1x1xf32>
      %c0_68 = arith.constant 0 : index
      %c0_69 = arith.constant 0 : index
      %82 = vector.load %arg3[%c0_68, %c0_69] : memref<1x1xf32, #tpu.memory_space<vmem>>, vector<1x1xf32>
      tpu.vector_store %arg3[%c0_68, %c0_69], %81 {strides = array<i32>} : memref<1x1xf32, #tpu.memory_space<vmem>>, vector<1x1xf32>,
    } else {
    }
    return
  }
  func.func @transform_0(%arg0: i32) -> (i32, i32, i32) {
    %c0_i32 = arith.constant 0 : i32
    %c0_i32_0 = arith.constant 0 : i32
    %c0_i32_1 = arith.constant 0 : i32
    return %arg0, %c0_i32, %c0_i32_0 : i32, i32, i32
  }
  func.func @transform_1(%arg0: i32) -> (i32, i32, i32) {
    %c0_i32 = arith.constant 0 : i32
    %c0_i32_0 = arith.constant 0 : i32
    %c0_i32_1 = arith.constant 0 : i32
    return %arg0, %c0_i32, %c0_i32_0 : i32, i32, i32
  }
  func.func @transform_2(%arg0: i32) -> (i32, i32) {
    %c0_i32 = arith.constant 0 : i32
    %c0_i32_0 = arith.constant 0 : i32
    %c0_i32_1 = arith.constant 0 : i32
    return %c0_i32, %c0_i32_0 : i32, i32
  }
}

</mosaic_0001>

<llo_original>
// kernel: tpu_custom_call.1
$region0: #{tpu_custom_call.1}
  #allocation0 [shape = 'u32[]', space=smem, size = 0x4, offset = 0x4, fixed_abs, tag = 'smem constant byte address 0x4 - core index']
  #allocation1 [shape = 'u32[72,128]{1,0:T(1,128)}', space=vmem, size = 0x9000, scoped, tag = 'internal scratch']
  #allocation2 [shape = 'f32[2,8,128]{2,1,0:T(8,128)}', space=vmem, size = 0x2000, scoped, tag = 'scratch operand']
  #allocation3 [shape = 'f32[1,8,128]{2,1,0:T(8,128)}', space=vmem, size = 0x1000, scoped, tag = 'scratch operand']
  %s0 = inlined_call_operand.hbm [shape: f32[2,8,128], index: 0, kind: input, shape index: {}]
  %s1 = inlined_call_operand.hbm [shape: f32[2,8,128], index: 1, kind: input, shape index: {}]
  %s2 = inlined_call_operand.hbm [shape: f32[1,1], index: 2, kind: output, shape index: {}]
  %s3 = sld [smem:[#allocation0]]
  $region34: #{tpu_custom_call.1} parent=0
    _
  %s5 = ssub.s32 1, %s3
  %s6 = scalar_select 0, %s5, %s3
  $region1: #{tpu_custom_call.1} parent=0
    #allocation4 [shape = 'u8[8192]{0}', space=vmem, size = 0x2000, scoped, tag = 'input window, operand 0, single buffered']
    #allocation5 [shape = 's32[1]{0}', space=sflag, size = 0x4, scoped, tag = 'scoped memory for tpu_custom_call.1']
    #allocation6 [shape = 's32[1]{0}', space=sflag, size = 0x4, scoped, tag = 'scoped memory for tpu_custom_call.1']
    #allocation7 [shape = 'u8[8192]{0}', space=vmem, size = 0x2000, scoped, tag = 'input window, operand 1, single buffered']
    #allocation8 [shape = 's32[1]{0}', space=sflag, size = 0x4, scoped, tag = 'scoped memory for tpu_custom_call.1']
    #allocation9 [shape = 'u8[512]{0}', space=vmem, size = 0x400, scoped, tag = 'output window, operand 0, single buffered']
    %7 = vsyncpa [#allocation5], 0
    %8 = vsyncpa [#allocation8], 0
    %9 = vsyncpa [#allocation6], 0
    // Predicated region
    $region2: #{tpu_custom_call.1} parent=1 // pred_check
      _
    $region3: #{tpu_custom_call.1} parent=1 // pred_check_branch
      %11 = sbr.rel (0) target = $region5
    $region4: #{tpu_custom_call.1} parent=1 // pred_region
      %13 = vsyncadd [#allocation5], 0
      %s14 = sshll.u32 %s0, 4
      %s15 = int_to_ptr.hbm [resolvable:$true] %s14
      %s16 = sshll.u32 [#allocation4], 4
      %s17 = int_to_ptr.vmem [resolvable:$true] %s16
      %22 = dma.hbm_to_vmem [thread:$0]  %s15, 256, %s17, [#allocation5], 128, 128, 8
    $region5: #{tpu_custom_call.1} parent=1 // pred_fallthru
      _
    // Predicated region
    $region6: #{tpu_custom_call.1} parent=1 // pred_check
      _
    $region7: #{tpu_custom_call.1} parent=1 // pred_check_branch
      %24 = sbr.rel (0) target = $region9
    $region8: #{tpu_custom_call.1} parent=1 // pred_region
      %26 = vsyncadd [#allocation8], 0
      %s27 = sshll.u32 %s1, 4
      %s28 = int_to_ptr.hbm [resolvable:$true] %s27
      %s29 = sshll.u32 [#allocation7], 4
      %s30 = int_to_ptr.vmem [resolvable:$true] %s29
      %35 = dma.hbm_to_vmem [thread:$0]  %s28, 256, %s30, [#allocation8], 128, 128, 8
    $region9: #{tpu_custom_call.1} parent=1 // pred_fallthru
      _
    // Predicated region
    $region10: #{tpu_custom_call.1} parent=1 // pred_check
      _
    $region11: #{tpu_custom_call.1} parent=1 // pred_check_branch
      %37 = sbr.rel (0) target = $region13
    $region12: #{tpu_custom_call.1} parent=1 // pred_region
      %39 = dma.done [#allocation5], 256
    $region13: #{tpu_custom_call.1} parent=1 // pred_fallthru
      _
    // Predicated region
    $region14: #{tpu_custom_call.1} parent=1 // pred_check
      _
    $region15: #{tpu_custom_call.1} parent=1 // pred_check_branch
      %41 = sbr.rel (0) target = $region17
    $region16: #{tpu_custom_call.1} parent=1 // pred_region
      %43 = dma.done [#allocation8], 256
    $region17: #{tpu_custom_call.1} parent=1 // pred_fallthru
      _
    %p44 = scmp.eq.s32.totalorder 0, 0
    // Predicated region
    $region18: #{tpu_custom_call.1} parent=1 // pred_check
      %p45 = pneg %p44
    $region19: #{tpu_custom_call.1} parent=1 // pred_check_branch
      %47 = sbr.rel (%p45) target = $region21
    $region20: #{tpu_custom_call.1} parent=1 // pred_region
      %48 = vst [vmem:[#allocation3] sm:$0xff] 0.0
    $region21: #{tpu_custom_call.1} parent=1 // pred_fallthru
      _
    %v49 = vld [vmem:[#allocation4] sm:$0xff]
    %v50 = vld [vmem:[#allocation4 + $0x8] sm:$0xff]
    %v51 = vld [vmem:[#allocation7] sm:$0xff]
    %v52 = vld [vmem:[#allocation7 + $0x8] sm:$0xff]
    %v53 = vsub.f32 %v49, %v51
    %v54 = vsub.f32 %v50, %v52
    %v55 = vld [vmem:[#allocation3] sm:$0xff]
    %v56 = vadd.f32 %v53, %v54
    %v57 = vadd.f32 %v55, %v56
    %58 = vst [vmem:[#allocation3] sm:$0xff] %v57
    %s59 = smul.u32 0, 2
    %s60 = smul.u32 %s59, 8
    %s61 = scalar_lea.vmem [#allocation2], %s60
    %62 = vst [vmem:[%s61] sm:$0xff] %v53
    %63 = vst [vmem:[%s61 + $0x8] sm:$0xff] %v54
    // Predicated region
    $region22: #{tpu_custom_call.1} parent=1 // pred_check
      %p64 = pneg %p44
    $region23: #{tpu_custom_call.1} parent=1 // pred_check_branch
      %66 = sbr.rel (%p64) target = $region25
    $region24: #{tpu_custom_call.1} parent=1 // pred_region
      %v67 = vld [vmem:[#allocation3] sm:$0xff]
      %68 = vadd.xlane.f32.xlu0 %v67
      %v69 = vpop.xlane.xlu0 %68
      %v70 = vrot.slane %v69, 4
      %v71 = vadd.f32 %v69, %v70
      %v72 = vrot.slane %v71, 2
      %v73 = vadd.f32 %v71, %v72
      %v74 = vrot.slane %v73, 1
      %v75 = vadd.f32 %v73, %v74
      %s76 = vtos %v75
      %v77 = vrcp.pop 2048.0
      %v78 = vmul.f32 2048.0, %v77
      %v79 = vsub.f32 1.0, %v78
      %v80 = vmul.f32 %v77, %v79
      %v81 = vadd.f32 %v77, %v80
      %vm82 = vweird.f32 %v77
      %v83 = vsel %vm82, %v77, %v81
      %s84 = vtos %v83
      %s85 = smul.f32 %s76, %s84
      %86 = vst [vmem:[#allocation3] sm:$0xff] 0.0
      %s87 = smul.u32 0, 8
      %s88 = scalar_lea.vmem [#allocation2], %s87
      %v89 = vld [vmem:[%s88] sm:$0xff]
      %v90 = vld [vmem:[%s88 + $0x8] sm:$0xff]
      %v91 = vstv %s85
      %v92 = vsub.f32 %v89, %v91
      %v93 = vsub.f32 %v90, %v91
      %v94 = vld [vmem:[#allocation3] sm:$0xff]
      %v95 = vmul.f32 %v92, %v92
      %v96 = vmul.f32 %v93, %v93
      %v97 = vadd.f32 %v95, %v96
      %v98 = vadd.f32 %v94, %v97
      %99 = vst [vmem:[#allocation3] sm:$0xff] %v98
      %v100 = vld [vmem:[#allocation3] sm:$0xff]
      %101 = vadd.xlane.f32.xlu0 %v100
      %v102 = vpop.xlane.xlu0 %101
      %v103 = vrot.slane %v102, 4
      %v104 = vadd.f32 %v102, %v103
      %v105 = vrot.slane %v104, 2
      %v106 = vadd.f32 %v104, %v105
      %v107 = vrot.slane %v106, 1
      %v108 = vadd.f32 %v106, %v107
      %s109 = vtos %v108
      %v110 = vrcp.pop 2047.0
      %v111 = vmul.f32 2047.0, %v110
      %v112 = vsub.f32 1.0, %v111
      %v113 = vmul.f32 %v110, %v112
      %v114 = vadd.f32 %v110, %v113
      %vm115 = vweird.f32 %v110
      %v116 = vsel %vm115, %v110, %v114
      %s117 = vtos %v116
      %s118 = smul.f32 %s109, %s117
      %s119 = smax.f32 %s118, 1e-30
      %v120 = vstv %s119
      %v121 = vrsqrt.pop %v120
      %v122 = vmul.f32 %v121, %v120
      %v123 = vmul.f32 %v122, %v121
      %v124 = vmul.f32 0.5, %v123
      %v125 = vsub.f32 1.5, %v124
      %v126 = vmul.f32 %v121, %v125
      %vm127 = vweird.f32 %v120
      %vm128 = vweird.f32 %v121
      %vm129 = vmor %vm127, %vm128
      %v130 = vsel %vm129, %v121, %v126
      %s131 = vtos %v130
      %132 = vst [vmem:[#allocation3] sm:$0xff] 0.0
      %v133 = vld [vmem:[%s88] sm:$0xff]
      %v134 = vld [vmem:[%s88 + $0x8] sm:$0xff]
      %v135 = vsub.f32 %v133, %v91
      %v136 = vsub.f32 %v134, %v91
      %v137 = vstv %s131
      %v138 = vmul.f32 %v135, %v137
      %v139 = vmul.f32 %v136, %v137
      %v140 = vld [vmem:[#allocation3] sm:$0xff]
      %v141 = vand.u32 2147483647, %v138
      %v142 = vand.u32 2147483647, %v139
      %v143 = vmul.f32 %v141, 0.21344717
      %v144 = vmul.f32 %v142, 0.21344717
      %v145 = vmul.f32 %v143, %v143
      %v146 = vmul.f32 %v144, %v144
      %v147 = vsub.f32 1.0, %v145
      %v148 = vsub.f32 1.0, %v146
      %vm149 = vcmp.lt.f32.partialorder %v141, 4.685
      %vm150 = vcmp.lt.f32.partialorder %v142, 4.685
      %v151 = vmul.f32 %v147, %v147
      %v152 = vmul.f32 %v148, %v148
      %v153 = vmul.f32 %v151, %v147
      %v154 = vmul.f32 %v152, %v148
      %v155 = vmul.f32 %v153, 3.658204
      %v156 = vmul.f32 %v154, 3.658204
      %v157 = vsel %vm149, 3.658204, %v155
      %v158 = vsel %vm150, 3.658204, %v156
      %v159 = vadd.f32 %v157, %v158
      %v160 = vadd.f32 %v140, %v159
      %161 = vst [vmem:[#allocation3] sm:$0xff] %v160
      %v162 = vld [vmem:[#allocation3] sm:$0xff]
      %163 = vadd.xlane.f32.xlu0 %v162
      %v164 = vpop.xlane.xlu0 %163
      %v165 = vrot.slane %v164, 4
      %v166 = vadd.f32 %v164, %v165
      %v167 = vrot.slane %v166, 2
      %v168 = vadd.f32 %v166, %v167
      %v169 = vrot.slane %v168, 1
      %v170 = vadd.f32 %v168, %v169
      %s171 = vtos %v170
      %v172 = vrcp.pop 2048.0
      %v173 = vmul.f32 2048.0, %v172
      %v174 = vsub.f32 1.0, %v173
      %v175 = vmul.f32 %v172, %v174
      %v176 = vadd.f32 %v172, %v175
      %vm177 = vweird.f32 %v172
      %v178 = vsel %vm177, %v172, %v176
      %s179 = vtos %v178
      %s180 = smul.f32 %s171, %s179
      %v181 = vstv %s180
      %vm182 = vcmask 0
      %183 = vst.msk [vmem:[#allocation9] sm:$0x1] %vm182, %v181
    $region25: #{tpu_custom_call.1} parent=1 // pred_fallthru
      _
    // Predicated region
    $region26: #{tpu_custom_call.1} parent=1 // pred_check
      _
    $region27: #{tpu_custom_call.1} parent=1 // pred_check_branch
      %185 = sbr.rel (0) target = $region29
    $region28: #{tpu_custom_call.1} parent=1 // pred_region
      %187 = vsyncadd [#allocation6], 0
      %s189 = sshll.u32 [#allocation9], 4
      %s190 = int_to_ptr.vmem [resolvable:$true] %s189
      %s191 = sshll.u32 %s2, 4
      %s192 = int_to_ptr.hbm [resolvable:$true] %s191
      %194 = dma.vmem_to_hbm [thread:$0]  %s190, 16, %s192, [#allocation6]
    $region29: #{tpu_custom_call.1} parent=1 // pred_fallthru
      _
    // Predicated region
    $region30: #{tpu_custom_call.1} parent=1 // pred_check
      _
    $region31: #{tpu_custom_call.1} parent=1 // pred_check_branch
      %196 = sbr.rel (0) target = $region33
    $region32: #{tpu_custom_call.1} parent=1 // pred_region
      %198 = dma.done [#allocation6], 16
    $region33: #{tpu_custom_call.1} parent=1 // pred_fallthru
      _
    %199 = vsyncpa [#allocation5], 1
    %200 = vsyncpa [#allocation8], 1
    %201 = vsyncpa [#allocation6], 1

</llo_original>
